<compile_context>
chip_gen: v6e
topology: v6e:2x2x1
jax: 0.10.0
libtpu: 0.0.40
codegen_flags: <defaults>
</compile_context>

<pallas_src>
import jax
import jax.numpy as jnp
from jax.experimental import pallas as pl
from jax.experimental.pallas import tpu as pltpu

HIDDEN = 32   # fc1 output width (nn.Linear(input_dim, 32))
OUT = 2       # fc2 output width (nn.Linear(32, 2))


def _mydnn_kernel(x_ref, w1_ref, b1_ref, w2_ref, b2_ref, o_ref):
    # fc1: (TB, D) @ (D, 32) on the MXU with f32 accumulation, + bias, ReLU.
    h = jnp.dot(x_ref[...], w1_ref[...], preferred_element_type=jnp.float32)
    h = jnp.maximum(h + b1_ref[...], 0.0)
    # fc2: (TB, 32) @ (32, 2), + bias, ReLU. Output block is (TB, 2) -- narrow
    # store; the vst slot has plenty of slack so no lane padding is needed.
    y = jnp.dot(h, w2_ref[...], preferred_element_type=jnp.float32)
    y = jnp.maximum(y + b2_ref[...], 0.0)
    o_ref[...] = y.astype(o_ref.dtype)


def _round_up(n, m):
    return ((n + m - 1) // m) * m


def _mydnn_forward_impl(x, w1, b1, w2, b2, *, block_b=4096):
    """Pallas forward for MyDNN.

    x : (B, D) float32
    w1: (32, D), b1: (32,)   (PyTorch nn.Linear layout: (out, in))
    w2: (2, 32), b2: (2,)
    returns (B, 2) float32
    """
    B, D = x.shape

    # ---- wrapper-side layout prep (cheap; fuses under jit) -----------------
    x = x.astype(jnp.float32)
    w1_t = jnp.transpose(w1).astype(jnp.float32)             # (D, 32)
    b1_r = jnp.reshape(b1, (1, HIDDEN)).astype(jnp.float32)  # (1, 32)
    w2_t = jnp.transpose(w2).astype(jnp.float32)             # (32, 2)
    b2_r = jnp.reshape(b2, (1, OUT)).astype(jnp.float32)     # (1, 2)

    # ---- batch tiling -------------------------------------------------------
    # Multiple of 8 (f32 sublane); cap at ceil(B/2) so large batches give >= 2
    # tiles and both TensorCores get work on v7x. Small B -> a single tiny tile.
    tb = max(8, min(block_b, _round_up(pl.cdiv(B, 2), 8)))
    bp = _round_up(B, tb)
    if bp != B:
        # Ragged tail: pad rows; padded rows produce garbage Q-values that are
        # sliced off below (never reduced over).
        x = jnp.pad(x, ((0, bp - B), (0, 0)))
    grid = (bp // tb,)

    out = pl.pallas_call(
        _mydnn_kernel,
        out_shape=jax.ShapeDtypeStruct((bp, OUT), jnp.float32),
        grid=grid,
        in_specs=[
            pl.BlockSpec((tb, D), lambda i: (i, 0)),          # x: streamed tiles
            pl.BlockSpec((D, HIDDEN), lambda i: (0, 0)),      # W1^T: resident
            pl.BlockSpec((1, HIDDEN), lambda i: (0, 0)),      # b1:   resident
            pl.BlockSpec((HIDDEN, OUT), lambda i: (0, 0)),    # W2^T: resident
            pl.BlockSpec((1, OUT), lambda i: (0, 0)),         # b2:   resident
        ],
        out_specs=pl.BlockSpec((tb, OUT), lambda i: (i, 0)),  # narrow f32 output
        compiler_params=pltpu.CompilerParams(
            dimension_semantics=("parallel",),                # 2 TCs on v7x
        ),
    )(x, w1_t, b1_r, w2_t, b2_r)

    return out if bp == B else out[:B]


mydnn_forward = jax.jit(_mydnn_forward_impl, static_argnames=("block_b",))


if __name__ == "__main__":
    key = jax.random.PRNGKey(0)
    kx, k1, k2, k3, k4 = jax.random.split(key, 5)

    batch, input_dim = 8, 8
    x = jax.random.normal(kx, (batch, input_dim), jnp.float32)
    # PyTorch init: weight.data.normal_(0, 0.1), weight shape (out, in);
    # nn.Linear default bias init U(-1/sqrt(fan_in), 1/sqrt(fan_in)).
    w1 = 0.1 * jax.random.normal(k1, (HIDDEN, input_dim), jnp.float32)
    w2 = 0.1 * jax.random.normal(k2, (OUT, HIDDEN), jnp.float32)
    b1 = jax.random.uniform(k3, (HIDDEN,), jnp.float32,
                            minval=-1.0 / jnp.sqrt(input_dim),
                            maxval=1.0 / jnp.sqrt(input_dim))
    b2 = jax.random.uniform(k4, (OUT,), jnp.float32,
                            minval=-1.0 / jnp.sqrt(HIDDEN),
                            maxval=1.0 / jnp.sqrt(HIDDEN))

    out = jax.block_until_ready(mydnn_forward(x, w1, b1, w2, b2))

    # Plain-JAX f32 reference (matches the PyTorch forward, including the
    # ReLU on the Q-head, which IS present in the reference module).
    ref = jnp.maximum(
        jnp.maximum(jnp.dot(x, w1.T, precision=jax.lax.Precision.HIGHEST) + b1,
                    0.0) @ w2.T + b2,
        0.0)

    assert out.shape == (batch, OUT)
    assert bool(jnp.allclose(out, ref, atol=1e-2, rtol=1e-2)), "mismatch vs reference"
    print("KERNEL_OK")
</pallas_src>

<mosaic_0001>
module attributes {stable_mosaic.version = 11 : i64} {
  func.func @_mydnn_kernel(%arg0: i32, %arg1: memref<8x8xf32, #tpu.memory_space<vmem>>, %arg2: memref<8x32xf32, #tpu.memory_space<vmem>>, %arg3: memref<1x32xf32, #tpu.memory_space<vmem>>, %arg4: memref<32x2xf32, #tpu.memory_space<vmem>>, %arg5: memref<1x2xf32, #tpu.memory_space<vmem>>, %arg6: memref<8x2xf32, #tpu.memory_space<vmem>>) attributes {dimension_semantics = [#tpu.dimension_semantics<parallel>], iteration_bounds = array<i64: 1>, scalar_prefetch = 0 : i64, scratch_operands = 0 : i64, tpu.core_type = #tpu.core_type<tc>, window_params = [{transform_indices = @transform_0, window_bounds = array<i64: 8, 8>}, {pipeline_mode = #tpu.pipeline_mode<synchronous>, transform_indices = @transform_1, window_bounds = array<i64: 8, 32>}, {pipeline_mode = #tpu.pipeline_mode<synchronous>, transform_indices = @transform_2, window_bounds = array<i64: 1, 32>}, {pipeline_mode = #tpu.pipeline_mode<synchronous>, transform_indices = @transform_3, window_bounds = array<i64: 32, 2>}, {pipeline_mode = #tpu.pipeline_mode<synchronous>, transform_indices = @transform_4, window_bounds = array<i64: 1, 2>}, {transform_indices = @transform_5, window_bounds = array<i64: 8, 2>}]} {
    %c0 = arith.constant 0 : index
    %c0_0 = arith.constant 0 : index
    %0 = vector.load %arg1[%c0, %c0_0] : memref<8x8xf32, #tpu.memory_space<vmem>>, vector<8x8xf32>
    %c0_1 = arith.constant 0 : index
    %c0_2 = arith.constant 0 : index
    %1 = vector.load %arg2[%c0_1, %c0_2] : memref<8x32xf32, #tpu.memory_space<vmem>>, vector<8x32xf32>
    %cst = arith.constant dense<0.000000e+00> : vector<8x32xf32>
    %2 = tpu.matmul %0, %1, %cst {dimension_numbers = #tpu.dot_dimension_numbers<[1], [0], [0], [1], [0, 0, 1, 1], [], []>} : vector<8x8xf32>, vector<8x32xf32>, vector<8x32xf32> -> vector<8x32xf32>
    %c0_3 = arith.constant 0 : index
    %c0_4 = arith.constant 0 : index
    %3 = vector.load %arg3[%c0_3, %c0_4] : memref<1x32xf32, #tpu.memory_space<vmem>>, vector<1x32xf32>
    %4 = vector.broadcast %3 : vector<1x32xf32> to vector<8x32xf32>
    %5 = arith.addf %2, %4 : vector<8x32xf32>
    %cst_5 = arith.constant 0.000000e+00 : f32
    %6 = vector.broadcast %cst_5 : f32 to vector<8x32xf32>
    %7 = arith.maximumf %5, %6 : vector<8x32xf32>
    %c0_6 = arith.constant 0 : index
    %c0_7 = arith.constant 0 : index
    %8 = vector.load %arg4[%c0_6, %c0_7] : memref<32x2xf32, #tpu.memory_space<vmem>>, vector<32x2xf32>
    %cst_8 = arith.constant dense<0.000000e+00> : vector<8x2xf32>
    %9 = tpu.matmul %7, %8, %cst_8 {dimension_numbers = #tpu.dot_dimension_numbers<[1], [0], [0], [1], [0, 0, 1, 1], [], []>} : vector<8x32xf32>, vector<32x2xf32>, vector<8x2xf32> -> vector<8x2xf32>
    %c0_9 = arith.constant 0 : index
    %c0_10 = arith.constant 0 : index
    %10 = vector.load %arg5[%c0_9, %c0_10] : memref<1x2xf32, #tpu.memory_space<vmem>>, vector<1x2xf32>
    %11 = vector.broadcast %10 : vector<1x2xf32> to vector<8x2xf32>
    %12 = arith.addf %9, %11 : vector<8x2xf32>
    %cst_11 = arith.constant 0.000000e+00 : f32
    %13 = vector.broadcast %cst_11 : f32 to vector<8x2xf32>
    %14 = arith.maximumf %12, %13 : vector<8x2xf32>
    %c0_12 = arith.constant 0 : index
    %c0_13 = arith.constant 0 : index
    %15 = vector.load %arg6[%c0_12, %c0_13] : memref<8x2xf32, #tpu.memory_space<vmem>>, vector<8x2xf32>
    tpu.vector_store %arg6[%c0_12, %c0_13], %14 {strides = array<i32>} : memref<8x2xf32, #tpu.memory_space<vmem>>, vector<8x2xf32>,
    return
  }
  func.func @transform_0(%arg0: i32) -> (i32, i32) {
    %c0_i32 = arith.constant 0 : i32
    %c0_i32_0 = arith.constant 0 : i32
    return %arg0, %c0_i32 : i32, i32
  }
  func.func @transform_1(%arg0: i32) -> (i32, i32) {
    %c0_i32 = arith.constant 0 : i32
    %c0_i32_0 = arith.constant 0 : i32
    %c0_i32_1 = arith.constant 0 : i32
    return %c0_i32, %c0_i32_0 : i32, i32
  }
  func.func @transform_2(%arg0: i32) -> (i32, i32) {
    %c0_i32 = arith.constant 0 : i32
    %c0_i32_0 = arith.constant 0 : i32
    %c0_i32_1 = arith.constant 0 : i32
    return %c0_i32, %c0_i32_0 : i32, i32
  }
  func.func @transform_3(%arg0: i32) -> (i32, i32) {
    %c0_i32 = arith.constant 0 : i32
    %c0_i32_0 = arith.constant 0 : i32
    %c0_i32_1 = arith.constant 0 : i32
    return %c0_i32, %c0_i32_0 : i32, i32
  }
  func.func @transform_4(%arg0: i32) -> (i32, i32) {
    %c0_i32 = arith.constant 0 : i32
    %c0_i32_0 = arith.constant 0 : i32
    %c0_i32_1 = arith.constant 0 : i32
    return %c0_i32, %c0_i32_0 : i32, i32
  }
  func.func @transform_5(%arg0: i32) -> (i32, i32) {
    %c0_i32 = arith.constant 0 : i32
    %c0_i32_0 = arith.constant 0 : i32
    return %arg0, %c0_i32 : i32, i32
  }
}

</mosaic_0001>

<llo_original>
// kernel: _mydnn_forward_impl.1
$region0: #{_mydnn_forward_impl.1}
  #allocation0 [shape = 'u32[]', space=smem, size = 0x4, offset = 0x4, fixed_abs, tag = 'smem constant byte address 0x4 - core index']
  #allocation1 [shape = 'u32[144,128]{1,0:T(1,128)}', space=vmem, size = 0x12000, scoped, tag = 'internal scratch']
  %s0 = inlined_call_operand.vmem [shape: f32[8,8], index: 0, kind: input, shape index: {}]
  %s1 = inlined_call_operand.vmem [shape: f32[8,32], index: 1, kind: input, shape index: {}]
  %s2 = inlined_call_operand.vmem [shape: f32[1,32], index: 2, kind: input, shape index: {}]
  %s3 = inlined_call_operand.vmem [shape: f32[32,2], index: 3, kind: input, shape index: {}]
  %s4 = inlined_call_operand.vmem [shape: f32[1,2], index: 4, kind: input, shape index: {}]
  %s5 = inlined_call_operand.vmem [shape: f32[8,2], index: 5, kind: output, shape index: {}]
  %s6 = sld [smem:[#allocation0]]
  $region30: #{_mydnn_forward_impl.1} parent=0
    _
  %s8 = ssub.s32 1, %s6
  %s9 = scalar_select 0, %s8, %s6
  // Predicated region
  $region2: #{_mydnn_forward_impl.1} parent=0 // pred_check
    _
  $region3: #{_mydnn_forward_impl.1} parent=0 // pred_check_branch
    %11 = sbr.rel (0) target = $region5
  $region4: #{_mydnn_forward_impl.1} parent=0 // pred_region
    _
  $region5: #{_mydnn_forward_impl.1} parent=0 // pred_fallthru
    _
  // Predicated region
  $region6: #{_mydnn_forward_impl.1} parent=0 // pred_check
    _
  $region7: #{_mydnn_forward_impl.1} parent=0 // pred_check_branch
    %13 = sbr.rel (0) target = $region9
  $region8: #{_mydnn_forward_impl.1} parent=0 // pred_region
    _
  $region9: #{_mydnn_forward_impl.1} parent=0 // pred_fallthru
    _
  // Predicated region
  $region10: #{_mydnn_forward_impl.1} parent=0 // pred_check
    _
  $region11: #{_mydnn_forward_impl.1} parent=0 // pred_check_branch
    %15 = sbr.rel (0) target = $region13
  $region12: #{_mydnn_forward_impl.1} parent=0 // pred_region
    _
  $region13: #{_mydnn_forward_impl.1} parent=0 // pred_fallthru
    _
  // Predicated region
  $region14: #{_mydnn_forward_impl.1} parent=0 // pred_check
    _
  $region15: #{_mydnn_forward_impl.1} parent=0 // pred_check_branch
    %17 = sbr.rel (0) target = $region17
  $region16: #{_mydnn_forward_impl.1} parent=0 // pred_region
    _
  $region17: #{_mydnn_forward_impl.1} parent=0 // pred_fallthru
    _
  // Predicated region
  $region18: #{_mydnn_forward_impl.1} parent=0 // pred_check
    _
  $region19: #{_mydnn_forward_impl.1} parent=0 // pred_check_branch
    %19 = sbr.rel (0) target = $region21
  $region20: #{_mydnn_forward_impl.1} parent=0 // pred_region
    _
  $region21: #{_mydnn_forward_impl.1} parent=0 // pred_fallthru
    _
  %v20 = vld [vmem:[%s0] sm:$0xff]
  %v21 = vld [vmem:[%s1] sm:$0xff]
  %v22 = vld [vmem:[%s2] sm:$0x1]
  %v24 = vlaneseq
  %v25 = vshrl.u32 %v24, 7
  %v26 = vsub.s32 0, %v25
  %v27 = vrot.slane %v22, %v26
  %vm29 = vcmask 64512
  %v31 = vsel %vm29, %v20, 0
  %33 = vmatprep.subr.mxu0 0.0
  %34 = vmatpush1.msra.mxu0 0.0
  %35 = vmatprep.subr.mxu0 0.0
  %36 = vmatpush1.msra.mxu0 0.0
  %37 = vmatprep.subr.mxu0 0.0
  %38 = vmatpush1.msra.mxu0 0.0
  %39 = vmatprep.subr.mxu0 0.0
  %40 = vmatpush1.msra.mxu0 0.0
  %41 = vmatprep.subr.mxu0 0.0
  %42 = vmatpush1.msra.mxu0 0.0
  %43 = vmatprep.subr.mxu0 0.0
  %44 = vmatpush1.msra.mxu0 0.0
  %45 = vmatprep.subr.mxu0 0.0
  %46 = vmatpush1.msra.mxu0 0.0
  %47 = vmatprep.subr.mxu0 0.0
  %48 = vmatpush1.msra.mxu0 0.0
  %49 = vmatprep.subr.mxu0 0.0
  %50 = vmatpush1.msra.mxu0 0.0
  %51 = vmatprep.subr.mxu0 0.0
  %52 = vmatpush1.msra.mxu0 0.0
  %53 = vmatprep.subr.mxu0 0.0
  %54 = vmatpush1.msra.mxu0 0.0
  %55 = vmatprep.subr.mxu0 0.0
  %56 = vmatpush1.msra.mxu0 0.0
  %57 = vmatprep.subr.mxu0 0.0
  %58 = vmatpush1.msra.mxu0 0.0
  %59 = vmatprep.subr.mxu0 0.0
  %60 = vmatpush1.msra.mxu0 0.0
  %61 = vmatprep.subr.mxu0 0.0
  %62 = vmatpush1.msra.mxu0 0.0
  %63 = vmatprep.subr.mxu0 0.0
  %64 = vmatpush1.msra.mxu0 %v21
  %65 = vmatprep.subr.mxu0 0.0
  %66 = vmatpush2.msra.mxu0 0.0
  %67 = vmatprep.subr.mxu0 0.0
  %68 = vmatpush2.msra.mxu0 0.0
  %69 = vmatprep.subr.mxu0 0.0
  %70 = vmatpush2.msra.mxu0 0.0
  %71 = vmatprep.subr.mxu0 0.0
  %72 = vmatpush2.msra.mxu0 0.0
  %73 = vmatprep.subr.mxu0 0.0
  %74 = vmatpush2.msra.mxu0 0.0
  %75 = vmatprep.subr.mxu0 0.0
  %76 = vmatpush2.msra.mxu0 0.0
  %77 = vmatprep.subr.mxu0 0.0
  %78 = vmatpush2.msra.mxu0 0.0
  %79 = vmatprep.subr.mxu0 0.0
  %80 = vmatpush2.msra.mxu0 0.0
  %81 = vmatprep.subr.mxu0 0.0
  %82 = vmatpush2.msra.mxu0 0.0
  %83 = vmatprep.subr.mxu0 0.0
  %84 = vmatpush2.msra.mxu0 0.0
  %85 = vmatprep.subr.mxu0 0.0
  %86 = vmatpush2.msra.mxu0 0.0
  %87 = vmatprep.subr.mxu0 0.0
  %88 = vmatpush2.msra.mxu0 0.0
  %89 = vmatprep.subr.mxu0 0.0
  %90 = vmatpush2.msra.mxu0 0.0
  %91 = vmatprep.subr.mxu0 0.0
  %92 = vmatpush2.msra.mxu0 0.0
  %93 = vmatprep.subr.mxu0 0.0
  %94 = vmatpush2.msra.mxu0 0.0
  %95 = vmatprep.subr.mxu0 0.0
  %96 = vmatpush2.msra.mxu0 0.0
  %97 = vmatprep.mubr.f32.mxu0 0.0
  %98 = vmatmul.mubr.f32.gmra.mxu0 %v31
  %v99 = vpop.f32.mrf.mxu0
  %v100 = vadd.f32 %v27, %v99
  %v101 = vpop.f32.mrf.mxu0
  %102 = vdwg.mxu0
  %v103 = vmax.f32 %v100, 0.0
  %v104 = vld [vmem:[%s3] sm:$0xff]
  %v105 = vld [vmem:[%s3 + $0x8] sm:$0xff]
  %v106 = vld [vmem:[%s3 + $0x10] sm:$0xff]
  %v107 = vld [vmem:[%s3 + $0x18] sm:$0xff]
  %v108 = vld [vmem:[%s4] sm:$0x1]
  %v110 = vlaneseq
  %v111 = vshrl.u32 %v110, 7
  %v112 = vsub.s32 0, %v111
  %v113 = vrot.slane %v108, %v112
  %vm115 = vcmask 261120
  %v117 = vsel %vm115, %v103, 0
  %119 = vmatprep.subr.mxu0 0.0
  %120 = vmatpush1.msra.mxu0 0.0
  %121 = vmatprep.subr.mxu0 0.0
  %122 = vmatpush1.msra.mxu0 0.0
  %123 = vmatprep.subr.mxu0 0.0
  %124 = vmatpush1.msra.mxu0 0.0
  %125 = vmatprep.subr.mxu0 0.0
  %126 = vmatpush1.msra.mxu0 0.0
  %127 = vmatprep.subr.mxu0 0.0
  %128 = vmatpush1.msra.mxu0 0.0
  %129 = vmatprep.subr.mxu0 0.0
  %130 = vmatpush1.msra.mxu0 0.0
  %131 = vmatprep.subr.mxu0 0.0
  %132 = vmatpush1.msra.mxu0 0.0
  %133 = vmatprep.subr.mxu0 0.0
  %134 = vmatpush1.msra.mxu0 0.0
  %135 = vmatprep.subr.mxu0 0.0
  %136 = vmatpush1.msra.mxu0 0.0
  %137 = vmatprep.subr.mxu0 0.0
  %138 = vmatpush1.msra.mxu0 0.0
  %139 = vmatprep.subr.mxu0 0.0
  %140 = vmatpush1.msra.mxu0 0.0
  %141 = vmatprep.subr.mxu0 0.0
  %142 = vmatpush1.msra.mxu0 0.0
  %143 = vmatprep.subr.mxu0 0.0
  %144 = vmatpush1.msra.mxu0 %v107
  %145 = vmatprep.subr.mxu0 0.0
  %146 = vmatpush1.msra.mxu0 %v106
  %147 = vmatprep.subr.mxu0 0.0
  %148 = vmatpush1.msra.mxu0 %v105
  %149 = vmatprep.subr.mxu0 0.0
  %150 = vmatpush1.msra.mxu0 %v104
  %151 = vmatprep.subr.mxu0 0.0
  %152 = vmatpush2.msra.mxu0 0.0
  %153 = vmatprep.subr.mxu0 0.0
  %154 = vmatpush2.msra.mxu0 0.0
  %155 = vmatprep.subr.mxu0 0.0
  %156 = vmatpush2.msra.mxu0 0.0
  %157 = vmatprep.subr.mxu0 0.0
  %158 = vmatpush2.msra.mxu0 0.0
  %159 = vmatprep.subr.mxu0 0.0
  %160 = vmatpush2.msra.mxu0 0.0
  %161 = vmatprep.subr.mxu0 0.0
  %162 = vmatpush2.msra.mxu0 0.0
  %163 = vmatprep.subr.mxu0 0.0
  %164 = vmatpush2.msra.mxu0 0.0
  %165 = vmatprep.subr.mxu0 0.0
  %166 = vmatpush2.msra.mxu0 0.0
  %167 = vmatprep.subr.mxu0 0.0
  %168 = vmatpush2.msra.mxu0 0.0
  %169 = vmatprep.subr.mxu0 0.0
  %170 = vmatpush2.msra.mxu0 0.0
  %171 = vmatprep.subr.mxu0 0.0
  %172 = vmatpush2.msra.mxu0 0.0
  %173 = vmatprep.subr.mxu0 0.0
  %174 = vmatpush2.msra.mxu0 0.0
  %175 = vmatprep.subr.mxu0 0.0
  %176 = vmatpush2.msra.mxu0 0.0
  %177 = vmatprep.subr.mxu0 0.0
  %178 = vmatpush2.msra.mxu0 0.0
  %179 = vmatprep.subr.mxu0 0.0
  %180 = vmatpush2.msra.mxu0 0.0
  %181 = vmatprep.subr.mxu0 0.0
  %182 = vmatpush2.msra.mxu0 0.0
  %183 = vmatprep.mubr.f32.mxu0 0.0
  %184 = vmatmul.mubr.f32.gmra.mxu0 %v117
  %v185 = vpop.f32.mrf.mxu0
  %v186 = vadd.f32 %v113, %v185
  %v187 = vpop.f32.mrf.mxu0
  %188 = vdwg.mxu0
  %v189 = vmax.f32 %v186, 0.0
  %vm190 = vcmask 15360
  %191 = vst.msk [vmem:[%s5] sm:$0xff] %vm190, %v189
  // Predicated region
  $region22: #{_mydnn_forward_impl.1} parent=0 // pred_check
    _
  $region23: #{_mydnn_forward_impl.1} parent=0 // pred_check_branch
    %193 = sbr.rel (0) target = $region25
  $region24: #{_mydnn_forward_impl.1} parent=0 // pred_region
    _
  $region25: #{_mydnn_forward_impl.1} parent=0 // pred_fallthru
    _
  // Predicated region
  $region26: #{_mydnn_forward_impl.1} parent=0 // pred_check
    _
  $region27: #{_mydnn_forward_impl.1} parent=0 // pred_check_branch
    %195 = sbr.rel (0) target = $region29
  $region28: #{_mydnn_forward_impl.1} parent=0 // pred_region
    _
  $region29: #{_mydnn_forward_impl.1} parent=0 // pred_fallthru
    _

</llo_original>
